<compile_context>
chip_gen: v6e
topology: v6e:2x2x1
jax: 0.10.0
libtpu: 0.0.40
codegen_flags: <defaults>
</compile_context>

<pallas_src>
import functools
import math

import jax
import jax.numpy as jnp
from jax import lax
from jax.experimental import pallas as pl
from jax.experimental.pallas import tpu as pltpu


def _round_up(x, m):
    return ((x + m - 1) // m) * m


def _fused_kernel(fwd_ref, ivbp_ref, iv1_ref, q_ref, k_ref, v_ref, *out_refs,
                  top_k, with_corr):
    """One (batch, channel-block) tile:
         corr = band-passed circular cross-correlation(q, k)      [DFT-as-matmul, MXU]
         per-lane top-k lags + softmax over lags                   [VPU/XLU, stays in VMEM]
         out  = circular cross-correlation(v, lag-weight matrix)   [DFT-as-matmul, MXU]
    """
    cdt = fwd_ref.dtype                      # MXU operand dtype (bf16 by default)
    fwd = fwd_ref[...]                       # (2*Lfp, L) stacked [Re; Im] forward DFT
    lfp = fwd.shape[0] // 2
    L, bn = q_ref.shape

    def spectrum(x):                         # half-spectrum via ONE stacked matmul
        s = jnp.dot(fwd, x, preferred_element_type=jnp.float32)
        return s[:lfp], s[lfp:]              # (Lfp, bn) real / imag

    def cross_spec(xr, xi, yr, yi):          # X * conj(Y), stacked [Re; Im] for one inverse matmul
        rr = xr * yr + xi * yi
        ri = xi * yr - xr * yi
        return jnp.concatenate([rr, ri], axis=0).astype(cdt)

    qr, qi = spectrum(q_ref[...].astype(cdt))
    kr, ki = spectrum(k_ref[...].astype(cdt))
    corr = jnp.dot(ivbp_ref[...], cross_spec(qr, qi, kr, ki),
                   preferred_element_type=jnp.float32)              # (L, bn), band-passed

    # ---- per-channel top-k over lags (sublane axis) + softmax, fused in VMEM -------------
    tau = lax.broadcasted_iota(jnp.int32, (L, bn), 0)
    c = corr
    vals, delays = [], []
    for _ in range(top_k):                   # top_k = int(factor * log L) <= ~7: tiny static unroll
        m = jnp.max(c, axis=0, keepdims=True)                        # (1, bn)
        idx = jnp.min(jnp.where(c == m, tau, L), axis=0, keepdims=True)
        vals.append(m)
        delays.append(idx)
        c = jnp.where(tau == idx, -jnp.inf, c)

    mx = vals[0]
    for vv in vals[1:]:
        mx = jnp.maximum(mx, vv)
    exps = [jnp.exp(vv - mx) for vv in vals]
    den = exps[0]
    for e in exps[1:]:
        den = den + e
    inv = 1.0 / den
    # Dense lag-weight matrix A[tau, n] = softmax weight at the selected per-channel delays.
    a = jnp.zeros((L, bn), jnp.float32)
    for e, d in zip(exps, delays):
        a = a + jnp.where(tau == d, e * inv, 0.0)

    # ---- time-delay aggregation: delays_agg = circ-corr(values, A) (unmasked inverse DFT) --
    vr, vi = spectrum(v_ref[...].astype(cdt))
    ar, ai = spectrum(a.astype(cdt))
    out = jnp.dot(iv1_ref[...], cross_spec(vr, vi, ar, ai),
                  preferred_element_type=jnp.float32)

    out_refs[0][...] = out.astype(out_refs[0].dtype)
    if with_corr:
        out_refs[1][...] = corr.astype(out_refs[1].dtype)


def _autocorrelation_tpu(q_bln, k_bln, v_bln, fwd, iv_bp, iv_1, *, top_k, with_corr, block_n):
    B, L, Np = q_bln.shape
    bn = block_n
    assert Np % bn == 0
    grid = (B, Np // bn)

    def sig_spec():
        return pl.BlockSpec((None, L, bn), lambda b, i: (b, 0, i))

    # Grid-invariant DFT matrices: whole-array VMEM residents (single copy, no double-buffering).
    mat_spec = pl.BlockSpec(memory_space=pltpu.MemorySpace.VMEM)

    n_out = 2 if with_corr else 1
    out_shape = tuple(jax.ShapeDtypeStruct((B, L, Np), jnp.float32) for _ in range(n_out))
    out_specs = tuple(sig_spec() for _ in range(n_out))

    lf2 = fwd.shape[0]
    itemsize = jnp.dtype(fwd.dtype).itemsize
    mat_bytes = (fwd.size + iv_bp.size + iv_1.size) * itemsize
    blk_bytes = (3 + n_out) * 2 * L * bn * 4            # double-buffered signal / output blocks
    tmp_bytes = (8 * L + 6 * lf2) * bn * 4               # f32 working set inside the kernel
    vmem_limit = int(min(96 * 2**20, max(32 * 2**20, 2 * (mat_bytes + blk_bytes + tmp_bytes))))

    cost = pl.CostEstimate(
        flops=int(2 * 6 * L * lf2 * B * Np),
        transcendentals=int(B * Np * top_k),
        bytes_accessed=int((3 + n_out) * B * L * Np * 4 + mat_bytes),
    )

    return pl.pallas_call(
        functools.partial(_fused_kernel, top_k=top_k, with_corr=with_corr),
        out_shape=out_shape,
        grid=grid,
        in_specs=[mat_spec, mat_spec, mat_spec, sig_spec(), sig_spec(), sig_spec()],
        out_specs=out_specs,
        compiler_params=pltpu.CompilerParams(
            dimension_semantics=("parallel", "parallel"),
            vmem_limit_bytes=vmem_limit),
        cost_estimate=cost,
    )(fwd, iv_bp, iv_1, q_bln, k_bln, v_bln)


class AutoCorrelation:
    """JAX / Pallas-TPU port of the Autoformer AutoCorrelation forward pass."""

    def __init__(self, low_freq=0, high_freq=None, mask_flag=True, factor=1, scale=None,
                 attention_dropout=0.1, output_attention=False, band_pass=True,
                 block_n=512, compute_dtype=jnp.bfloat16):
        self.factor = factor
        self.scale = scale                   # unused by the reference forward
        self.mask_flag = mask_flag           # attn_mask unused by the reference forward
        self.output_attention = output_attention
        self.band = band_pass
        self.low_freq = low_freq
        self.high_freq = high_freq if high_freq is not None else 0.5
        self.block_n = block_n               # lane-block; consider 256 for long-L configs on v7x (64 MiB VMEM)
        self.compute_dtype = compute_dtype   # MXU operand dtype; bf16 = single-pass MXU, f32 accumulate
        self._mat_cache = {}
        # TODO(synk): attention_dropout is declared but never applied in the torch forward.

    # ---- host-side constant DFT matrices (Hermitian fold, band-pass mask, 1/L folded in) ----
    def _dft_matrices(self, L):
        key = (L, jnp.dtype(self.compute_dtype).name)
        if key in self._mat_cache:
            return self._mat_cache[key]
        Lf = L // 2 + 1
        Lfp = _round_up(Lf, 8)                                   # sublane-aligned half spectrum
        f = jnp.arange(Lf, dtype=jnp.float32)
        t = jnp.arange(L, dtype=jnp.float32)
        ang = 2.0 * jnp.pi * f[:, None] * t[None, :] / L         # (Lf, L)
        cos_p = jnp.pad(jnp.cos(ang), ((0, Lfp - Lf), (0, 0)))
        sin_p = jnp.pad(jnp.sin(ang), ((0, Lfp - Lf), (0, 0)))
        fwd = jnp.concatenate([cos_p, -sin_p], axis=0)           # (2Lfp, L): stacked [Re; Im] DFT
        # Hermitian-fold weights: 1x for DC (and Nyquist when L even), 2x otherwise.
        dc_nyq = (f == 0)
        if L % 2 == 0:
            dc_nyq = dc_nyq | (f == L // 2)
        w = jnp.where(dc_nyq, 1.0, 2.0)
        if self.band:
            fr = f * (2.0 * self.high_freq) / L                  # == torch.fft.rfftfreq(L, 1/(2*high))
            mask = ((fr > self.low_freq) & (fr < self.high_freq)).astype(jnp.float32)
        else:
            mask = jnp.ones((Lf,), jnp.float32)

        def inverse(scale):                                      # (L, 2Lfp), scale folded in
            sc = jnp.pad(scale, (0, Lfp - Lf))
            return jnp.concatenate([cos_p.T * sc[None, :], -sin_p.T * sc[None, :]], axis=1)

        mats = (fwd.astype(self.compute_dtype),
                inverse(mask * w / L).astype(self.compute_dtype),   # band-passed iDFT (for corr)
                inverse(w / L).astype(self.compute_dtype))          # plain iDFT (for aggregation)
        self._mat_cache[key] = mats
        return mats

    # ---- forward, single fused Pallas kernel -------------------------------------------------
    def __call__(self, queries, keys, values, attn_mask=None):
        B, L, H, E = queries.shape
        _, S, _, D = values.shape
        assert E == D, "AutoCorrelation requires E == D (d_keys == d_values)"
        # TODO(synk): for odd L torch's irfft (default n) yields length L-1; we use the length-L
        # circular correlation (n=L), which matches torch exactly for the even L Autoformer uses.
        if L > S:
            values = jnp.concatenate(
                [values, jnp.zeros((B, L - S, H, D), values.dtype)], axis=1)
            keys = jnp.concatenate(
                [keys, jnp.zeros((B, L - S, H, E), keys.dtype)], axis=1)
        else:
            values = values[:, :L]
            keys = keys[:, :L]

        HE = H * E
        # Lane-dense channel tiling with NO host transposes: (B,L,H,E) -> (B,L,H*E) is free.
        bn = max(128, (min(self.block_n, _round_up(HE, 128)) // 128) * 128)
        Np = _round_up(HE, bn)

        def flat(x):
            x = x.reshape(B, L, HE)
            return x if Np == HE else jnp.pad(x, ((0, 0), (0, 0), (0, Np - HE)))

        fwd, iv_bp, iv_1 = self._dft_matrices(L)
        top_k = max(1, min(int(self.factor * math.log(L)), L))

        outs = _autocorrelation_tpu(
            flat(queries), flat(keys), flat(values), fwd, iv_bp, iv_1,
            top_k=top_k, with_corr=self.output_attention, block_n=bn)

        V = outs[0][:, :, :HE].reshape(B, L, H, E)
        if self.output_attention:
            attn = outs[1][:, :, :HE].reshape(B, L, H, E)
            return V, attn
        return V, None

    # ---- pure-JAX FFT reference (mirrors the torch forward; checking only) --------------------
    def reference(self, queries, keys, values):
        B, L, H, E = queries.shape
        _, S, _, D = values.shape
        if L > S:
            values = jnp.concatenate(
                [values, jnp.zeros((B, L - S, H, D), values.dtype)], axis=1)
            keys = jnp.concatenate(
                [keys, jnp.zeros((B, L - S, H, E), keys.dtype)], axis=1)
        else:
            values = values[:, :L]
            keys = keys[:, :L]
        qp = queries.transpose(0, 2, 3, 1)                        # (B,H,E,L)
        kp = keys.transpose(0, 2, 3, 1)
        vp = values.transpose(0, 2, 3, 1)
        q_fft = jnp.fft.rfft(qp, axis=-1)
        k_fft = jnp.fft.rfft(kp, axis=-1)
        if self.band:
            fl = q_fft.shape[-1]
            freqs = jnp.fft.rfftfreq(L, d=1.0 / (2.0 * self.high_freq))[:fl]
            bp = ((freqs > self.low_freq) & (freqs < self.high_freq)).astype(jnp.float32)
            q_fft = q_fft * bp
            k_fft = k_fft * bp
        corr = jnp.fft.irfft(q_fft * jnp.conj(k_fft), n=L, axis=-1)   # (B,H,E,L)
        top_k = max(1, min(int(self.factor * math.log(L)), L))
        weights, delay = lax.top_k(corr, top_k)
        tmp_corr = jax.nn.softmax(weights, axis=-1)
        init_index = jnp.arange(L)
        tmp_values = jnp.concatenate([vp, vp], axis=-1)
        delays_agg = jnp.zeros_like(vp)
        for i in range(top_k):
            idx = init_index[None, None, None, :] + delay[..., i:i + 1]
            pattern = jnp.take_along_axis(tmp_values, idx, axis=-1)
            delays_agg = delays_agg + pattern * tmp_corr[..., i:i + 1]
        return delays_agg.transpose(0, 3, 1, 2), corr.transpose(0, 3, 1, 2)


if __name__ == "__main__":
    B, L, S, H, E = 2, 8, 8, 4, 8            # hidden = H*E = 32

    root = jax.random.PRNGKey(0)
    kp, kq, kk, kv, kr1, kr2 = jax.random.split(root, 6)

    # ---- test 1: periodic inputs (well-separated correlation peaks), check V ----------------
    t = jnp.arange(L, dtype=jnp.float32)
    phase = jax.random.uniform(kp, (B, 1, H, E), minval=0.0, maxval=2.0 * jnp.pi)
    base = jnp.sin(2.0 * jnp.pi * 2.0 * t[None, :, None, None] / L + phase)
    queries = base + 0.05 * jax.random.normal(kq, (B, L, H, E), jnp.float32)
    keys_in = base + 0.05 * jax.random.normal(kk, (B, S, H, E), jnp.float32)
    values_in = jax.random.normal(kv, (B, S, H, E), jnp.float32)

    layer = AutoCorrelation(factor=1, output_attention=False)
    V, attn = layer(queries, keys_in, values_in, None)
    V = jax.block_until_ready(V)
    assert V.shape == (B, L, H, E)
    assert attn is None

    V_ref, _ = layer.reference(queries, keys_in, values_in)
    err_v = float(jnp.max(jnp.abs(V - V_ref)))
    assert jnp.allclose(V, V_ref, atol=8e-2, rtol=5e-2), (
        f"V mismatch vs pure-JAX FFT reference, max abs err = {err_v}")

    # ---- test 2: random inputs, check the band-passed correlation scores (output_attention) --
    layer_attn = AutoCorrelation(factor=1, output_attention=True)
    q2 = jax.random.normal(kr1, (B, L, H, E), jnp.float32)
    k2 = jax.random.normal(kr2, (B, S, H, E), jnp.float32)
    V2, corr2 = layer_attn(q2, k2, values_in, None)
    corr2 = jax.block_until_ready(corr2)
    assert V2.shape == (B, L, H, E) and corr2.shape == (B, L, H, E)
    _, corr_ref = layer_attn.reference(q2, k2, values_in)
    err_c = float(jnp.max(jnp.abs(corr2 - corr_ref)))
    assert jnp.allclose(corr2, corr_ref, atol=2e-1, rtol=5e-2), (
        f"corr mismatch vs pure-JAX FFT reference, max abs err = {err_c}")

    print("KERNEL_OK")
</pallas_src>

<mosaic_0001>
module attributes {stable_mosaic.version = 11 : i64} {
  func.func @_fused_kernel(%arg0: i32, %arg1: i32, %arg2: memref<16x8xbf16, #tpu.memory_space<vmem>>, %arg3: memref<8x16xbf16, #tpu.memory_space<vmem>>, %arg4: memref<8x16xbf16, #tpu.memory_space<vmem>>, %arg5: memref<1x8x128xf32, #tpu.memory_space<vmem>>, %arg6: memref<1x8x128xf32, #tpu.memory_space<vmem>>, %arg7: memref<1x8x128xf32, #tpu.memory_space<vmem>>, %arg8: memref<1x8x128xf32, #tpu.memory_space<vmem>>) attributes {dimension_semantics = [#tpu.dimension_semantics<parallel>, #tpu.dimension_semantics<parallel>], iteration_bounds = array<i64: 2, 1>, scalar_prefetch = 0 : i64, scratch_operands = 0 : i64, tpu.core_type = #tpu.core_type<tc>, window_params = [{pipeline_mode = #tpu.pipeline_mode<synchronous>, transform_indices = @transform_0, window_bounds = array<i64: 16, 8>}, {pipeline_mode = #tpu.pipeline_mode<synchronous>, transform_indices = @transform_1, window_bounds = array<i64: 8, 16>}, {pipeline_mode = #tpu.pipeline_mode<synchronous>, transform_indices = @transform_2, window_bounds = array<i64: 8, 16>}, {transform_indices = @transform_3, window_bounds = array<i64: 1, 8, 128>}, {transform_indices = @transform_4, window_bounds = array<i64: 1, 8, 128>}, {transform_indices = @transform_5, window_bounds = array<i64: 1, 8, 128>}, {transform_indices = @transform_6, window_bounds = array<i64: 1, 8, 128>}]} {
    %c0 = arith.constant 0 : index
    %c0_0 = arith.constant 0 : index
    %0 = vector.load %arg2[%c0, %c0_0] : memref<16x8xbf16, #tpu.memory_space<vmem>>, vector<16x8xbf16>
    %c0_1 = arith.constant 0 : index
    %c0_2 = arith.constant 0 : index
    %c0_3 = arith.constant 0 : index
    %1 = vector.load %arg5[%c0_1, %c0_2, %c0_3] : memref<1x8x128xf32, #tpu.memory_space<vmem>>, vector<1x8x128xf32>
    %2 = vector.shape_cast %1 : vector<1x8x128xf32> to vector<8x128xf32>
    %3 = arith.truncf %2 : vector<8x128xf32> to vector<8x128xbf16>
    %cst = arith.constant dense<0.000000e+00> : vector<16x128xf32>
    %4 = tpu.matmul %0, %3, %cst {dimension_numbers = #tpu.dot_dimension_numbers<[1], [0], [0], [1], [0, 0, 1, 1], [], []>} : vector<16x8xbf16>, vector<8x128xbf16>, vector<16x128xf32> -> vector<16x128xf32>
    %5 = vector.extract_strided_slice %4 {offsets = [0, 0], sizes = [8, 128], strides = [1, 1]} : vector<16x128xf32> to vector<8x128xf32>
    %6 = vector.extract_strided_slice %4 {offsets = [8, 0], sizes = [8, 128], strides = [1, 1]} : vector<16x128xf32> to vector<8x128xf32>
    %c0_4 = arith.constant 0 : index
    %c0_5 = arith.constant 0 : index
    %c0_6 = arith.constant 0 : index
    %7 = vector.load %arg6[%c0_4, %c0_5, %c0_6] : memref<1x8x128xf32, #tpu.memory_space<vmem>>, vector<1x8x128xf32>
    %8 = vector.shape_cast %7 : vector<1x8x128xf32> to vector<8x128xf32>
    %9 = arith.truncf %8 : vector<8x128xf32> to vector<8x128xbf16>
    %cst_7 = arith.constant dense<0.000000e+00> : vector<16x128xf32>
    %10 = tpu.matmul %0, %9, %cst_7 {dimension_numbers = #tpu.dot_dimension_numbers<[1], [0], [0], [1], [0, 0, 1, 1], [], []>} : vector<16x8xbf16>, vector<8x128xbf16>, vector<16x128xf32> -> vector<16x128xf32>
    %11 = vector.extract_strided_slice %10 {offsets = [0, 0], sizes = [8, 128], strides = [1, 1]} : vector<16x128xf32> to vector<8x128xf32>
    %12 = vector.extract_strided_slice %10 {offsets = [8, 0], sizes = [8, 128], strides = [1, 1]} : vector<16x128xf32> to vector<8x128xf32>
    %c0_8 = arith.constant 0 : index
    %c0_9 = arith.constant 0 : index
    %13 = vector.load %arg3[%c0_8, %c0_9] : memref<8x16xbf16, #tpu.memory_space<vmem>>, vector<8x16xbf16>
    %14 = arith.mulf %5, %11 : vector<8x128xf32>
    %15 = arith.mulf %6, %12 : vector<8x128xf32>
    %16 = arith.addf %14, %15 : vector<8x128xf32>
    %17 = arith.mulf %6, %11 : vector<8x128xf32>
    %18 = arith.mulf %5, %12 : vector<8x128xf32>
    %19 = arith.subf %17, %18 : vector<8x128xf32>
    %20 = tpu.concatenate %16, %19 in 0 : vector<8x128xf32>, vector<8x128xf32> -> vector<16x128xf32>
    %21 = arith.truncf %20 : vector<16x128xf32> to vector<16x128xbf16>
    %cst_10 = arith.constant dense<0.000000e+00> : vector<8x128xf32>
    %22 = tpu.matmul %13, %21, %cst_10 {dimension_numbers = #tpu.dot_dimension_numbers<[1], [0], [0], [1], [0, 0, 1, 1], [], []>} : vector<8x16xbf16>, vector<16x128xbf16>, vector<8x128xf32> -> vector<8x128xf32>
    %23 = tpu.iota {dimensions = array<i32: 0>} : vector<8x128xi32>
    %cst_11 = arith.constant dense<0xFF800000> : vector<128xf32>
    %24 = vector.multi_reduction <maximumf>, %22, %cst_11 [0] : vector<8x128xf32> to vector<128xf32>
    %25 = vector.shape_cast %24 : vector<128xf32> to vector<1x128xf32>
    %26 = vector.broadcast %25 : vector<1x128xf32> to vector<8x128xf32>
    %27 = arith.cmpf oeq, %22, %26 : vector<8x128xf32>
    %c8_i32 = arith.constant 8 : i32
    %28 = vector.broadcast %c8_i32 : i32 to vector<8x128xi32>
    %29 = arith.select %27, %23, %28 : vector<8x128xi1>, vector<8x128xi32>
    %cst_12 = arith.constant dense<2147483647> : vector<128xi32>
    %30 = vector.multi_reduction <minsi>, %29, %cst_12 [0] : vector<8x128xi32> to vector<128xi32>
    %31 = vector.shape_cast %30 : vector<128xi32> to vector<1x128xi32>
    %32 = vector.broadcast %31 : vector<1x128xi32> to vector<8x128xi32>
    %33 = arith.cmpi eq, %23, %32 : vector<8x128xi32>
    %cst_13 = arith.constant 0xFF800000 : f32
    %34 = vector.broadcast %cst_13 : f32 to vector<8x128xf32>
    %35 = arith.select %33, %34, %22 : vector<8x128xi1>, vector<8x128xf32>
    %cst_14 = arith.constant dense<0xFF800000> : vector<128xf32>
    %36 = vector.multi_reduction <maximumf>, %35, %cst_14 [0] : vector<8x128xf32> to vector<128xf32>
    %37 = vector.shape_cast %36 : vector<128xf32> to vector<1x128xf32>
    %38 = vector.broadcast %37 : vector<1x128xf32> to vector<8x128xf32>
    %39 = arith.cmpf oeq, %35, %38 : vector<8x128xf32>
    %c8_i32_15 = arith.constant 8 : i32
    %40 = vector.broadcast %c8_i32_15 : i32 to vector<8x128xi32>
    %41 = arith.select %39, %23, %40 : vector<8x128xi1>, vector<8x128xi32>
    %cst_16 = arith.constant dense<2147483647> : vector<128xi32>
    %42 = vector.multi_reduction <minsi>, %41, %cst_16 [0] : vector<8x128xi32> to vector<128xi32>
    %43 = vector.shape_cast %42 : vector<128xi32> to vector<1x128xi32>
    %44 = arith.maximumf %25, %37 : vector<1x128xf32>
    %45 = arith.subf %25, %44 : vector<1x128xf32>
    %46 = math.exp %45 : vector<1x128xf32>
    %47 = arith.subf %37, %44 : vector<1x128xf32>
    %48 = math.exp %47 : vector<1x128xf32>
    %49 = arith.addf %46, %48 : vector<1x128xf32>
    %cst_17 = arith.constant 1.000000e+00 : f32
    %50 = vector.broadcast %cst_17 : f32 to vector<1x128xf32>
    %51 = arith.divf %50, %49 : vector<1x128xf32>
    %cst_18 = arith.constant 0.000000e+00 : f32
    %52 = vector.broadcast %cst_18 : f32 to vector<8x128xf32>
    %53 = vector.broadcast %31 : vector<1x128xi32> to vector<8x128xi32>
    %54 = arith.cmpi eq, %23, %53 : vector<8x128xi32>
    %55 = arith.mulf %46, %51 : vector<1x128xf32>
    %cst_19 = arith.constant 0.000000e+00 : f32
    %56 = vector.shape_cast %55 : vector<1x128xf32> to vector<1x128xf32>
    %57 = vector.broadcast %56 : vector<1x128xf32> to vector<8x128xf32>
    %58 = vector.broadcast %cst_19 : f32 to vector<8x128xf32>
    %59 = arith.select %54, %57, %58 : vector<8x128xi1>, vector<8x128xf32>
    %60 = arith.addf %52, %59 : vector<8x128xf32>
    %61 = vector.broadcast %43 : vector<1x128xi32> to vector<8x128xi32>
    %62 = arith.cmpi eq, %23, %61 : vector<8x128xi32>
    %63 = arith.mulf %48, %51 : vector<1x128xf32>
    %cst_20 = arith.constant 0.000000e+00 : f32
    %64 = vector.shape_cast %63 : vector<1x128xf32> to vector<1x128xf32>
    %65 = vector.broadcast %64 : vector<1x128xf32> to vector<8x128xf32>
    %66 = vector.broadcast %cst_20 : f32 to vector<8x128xf32>
    %67 = arith.select %62, %65, %66 : vector<8x128xi1>, vector<8x128xf32>
    %68 = arith.addf %60, %67 : vector<8x128xf32>
    %c0_21 = arith.constant 0 : index
    %c0_22 = arith.constant 0 : index
    %c0_23 = arith.constant 0 : index
    %69 = vector.load %arg7[%c0_21, %c0_22, %c0_23] : memref<1x8x128xf32, #tpu.memory_space<vmem>>, vector<1x8x128xf32>
    %70 = vector.shape_cast %69 : vector<1x8x128xf32> to vector<8x128xf32>
    %71 = arith.truncf %70 : vector<8x128xf32> to vector<8x128xbf16>
    %cst_24 = arith.constant dense<0.000000e+00> : vector<16x128xf32>
    %72 = tpu.matmul %0, %71, %cst_24 {dimension_numbers = #tpu.dot_dimension_numbers<[1], [0], [0], [1], [0, 0, 1, 1], [], []>} : vector<16x8xbf16>, vector<8x128xbf16>, vector<16x128xf32> -> vector<16x128xf32>
    %73 = vector.extract_strided_slice %72 {offsets = [0, 0], sizes = [8, 128], strides = [1, 1]} : vector<16x128xf32> to vector<8x128xf32>
    %74 = vector.extract_strided_slice %72 {offsets = [8, 0], sizes = [8, 128], strides = [1, 1]} : vector<16x128xf32> to vector<8x128xf32>
    %75 = arith.truncf %68 : vector<8x128xf32> to vector<8x128xbf16>
    %cst_25 = arith.constant dense<0.000000e+00> : vector<16x128xf32>
    %76 = tpu.matmul %0, %75, %cst_25 {dimension_numbers = #tpu.dot_dimension_numbers<[1], [0], [0], [1], [0, 0, 1, 1], [], []>} : vector<16x8xbf16>, vector<8x128xbf16>, vector<16x128xf32> -> vector<16x128xf32>
    %77 = vector.extract_strided_slice %76 {offsets = [0, 0], sizes = [8, 128], strides = [1, 1]} : vector<16x128xf32> to vector<8x128xf32>
    %78 = vector.extract_strided_slice %76 {offsets = [8, 0], sizes = [8, 128], strides = [1, 1]} : vector<16x128xf32> to vector<8x128xf32>
    %c0_26 = arith.constant 0 : index
    %c0_27 = arith.constant 0 : index
    %79 = vector.load %arg4[%c0_26, %c0_27] : memref<8x16xbf16, #tpu.memory_space<vmem>>, vector<8x16xbf16>
    %80 = arith.mulf %73, %77 : vector<8x128xf32>
    %81 = arith.mulf %74, %78 : vector<8x128xf32>
    %82 = arith.addf %80, %81 : vector<8x128xf32>
    %83 = arith.mulf %74, %77 : vector<8x128xf32>
    %84 = arith.mulf %73, %78 : vector<8x128xf32>
    %85 = arith.subf %83, %84 : vector<8x128xf32>
    %86 = tpu.concatenate %82, %85 in 0 : vector<8x128xf32>, vector<8x128xf32> -> vector<16x128xf32>
    %87 = arith.truncf %86 : vector<16x128xf32> to vector<16x128xbf16>
    %cst_28 = arith.constant dense<0.000000e+00> : vector<8x128xf32>
    %88 = tpu.matmul %79, %87, %cst_28 {dimension_numbers = #tpu.dot_dimension_numbers<[1], [0], [0], [1], [0, 0, 1, 1], [], []>} : vector<8x16xbf16>, vector<16x128xbf16>, vector<8x128xf32> -> vector<8x128xf32>
    %c0_29 = arith.constant 0 : index
    %c0_30 = arith.constant 0 : index
    %c0_31 = arith.constant 0 : index
    %89 = vector.load %arg8[%c0_29, %c0_30, %c0_31] : memref<1x8x128xf32, #tpu.memory_space<vmem>>, vector<1x8x128xf32>
    %90 = vector.shape_cast %89 : vector<1x8x128xf32> to vector<8x128xf32>
    %91 = vector.shape_cast %88 : vector<8x128xf32> to vector<1x8x128xf32>
    tpu.vector_store %arg8[%c0_29, %c0_30, %c0_31], %91 {strides = array<i32>} : memref<1x8x128xf32, #tpu.memory_space<vmem>>, vector<1x8x128xf32>,
    return
  }
  func.func @transform_0(%arg0: i32, %arg1: i32) -> (i32, i32) {
    %c0_i32 = arith.constant 0 : i32
    %c0_i32_0 = arith.constant 0 : i32
    %c0_i32_1 = arith.constant 0 : i32
    return %c0_i32, %c0_i32_0 : i32, i32
  }
  func.func @transform_1(%arg0: i32, %arg1: i32) -> (i32, i32) {
    %c0_i32 = arith.constant 0 : i32
    %c0_i32_0 = arith.constant 0 : i32
    %c0_i32_1 = arith.constant 0 : i32
    return %c0_i32, %c0_i32_0 : i32, i32
  }
  func.func @transform_2(%arg0: i32, %arg1: i32) -> (i32, i32) {
    %c0_i32 = arith.constant 0 : i32
    %c0_i32_0 = arith.constant 0 : i32
    %c0_i32_1 = arith.constant 0 : i32
    return %c0_i32, %c0_i32_0 : i32, i32
  }
  func.func @transform_3(%arg0: i32, %arg1: i32) -> (i32, i32, i32) {
    %c0_i32 = arith.constant 0 : i32
    %c0_i32_0 = arith.constant 0 : i32
    return %arg0, %c0_i32, %arg1 : i32, i32, i32
  }
  func.func @transform_4(%arg0: i32, %arg1: i32) -> (i32, i32, i32) {
    %c0_i32 = arith.constant 0 : i32
    %c0_i32_0 = arith.constant 0 : i32
    return %arg0, %c0_i32, %arg1 : i32, i32, i32
  }
  func.func @transform_5(%arg0: i32, %arg1: i32) -> (i32, i32, i32) {
    %c0_i32 = arith.constant 0 : i32
    %c0_i32_0 = arith.constant 0 : i32
    return %arg0, %c0_i32, %arg1 : i32, i32, i32
  }
  func.func @transform_6(%arg0: i32, %arg1: i32) -> (i32, i32, i32) {
    %c0_i32 = arith.constant 0 : i32
    %c0_i32_0 = arith.constant 0 : i32
    return %arg0, %c0_i32, %arg1 : i32, i32, i32
  }
}

</mosaic_0001>

<llo_original>
// kernel: tpu_custom_call.1
$region0: #{tpu_custom_call.1}
  #allocation0 [shape = 'u32[]', space=smem, size = 0x4, offset = 0x4, fixed_abs, tag = 'smem constant byte address 0x4 - core index']
  #allocation1 [shape = 'u32[144,128]{1,0:T(1,128)}', space=vmem, size = 0x12000, scoped, tag = 'internal scratch']
  %s0 = inlined_call_operand.vmem [shape: bf16[16,8], index: 0, kind: input, shape index: {}]
  %s1 = inlined_call_operand.hbm [shape: bf16[8,16], index: 1, kind: input, shape index: {}]
  %s2 = inlined_call_operand.hbm [shape: bf16[8,16], index: 2, kind: input, shape index: {}]
  %s3 = inlined_call_operand.vmem [shape: f32[2,8,128], index: 3, kind: input, shape index: {}]
  %s4 = inlined_call_operand.hbm [shape: f32[2,8,128], index: 4, kind: input, shape index: {}]
  %s5 = inlined_call_operand.hbm [shape: f32[2,8,128], index: 5, kind: input, shape index: {}]
  %s6 = inlined_call_operand.hbm [shape: f32[2,8,128], index: 6, kind: output, shape index: {}]
  %s7 = sld [smem:[#allocation0]]
  $region73: #{tpu_custom_call.1} parent=0
    _
  %s9 = ssub.s32 1, %s7
  %s10 = scalar_select 0, %s9, %s7
  $region1: #{tpu_custom_call.1} parent=0
    #allocation2 [shape = 'u8[2048]{0}', space=vmem, size = 0x800, scoped, tag = 'input window, operand 1, single buffered']
    #allocation3 [shape = 's32[2]{0}', space=sflag, size = 0x8, scoped, tag = 'scoped memory for tpu_custom_call.1']
    #allocation4 [shape = 's32[2]{0}', space=sflag, size = 0x8, scoped, tag = 'scoped memory for tpu_custom_call.1']
    #allocation5 [shape = 'u8[2048]{0}', space=vmem, size = 0x800, scoped, tag = 'input window, operand 2, single buffered']
    #allocation6 [shape = 's32[1]{0}', space=sflag, size = 0x4, scoped, tag = 'scoped memory for tpu_custom_call.1']
    #allocation7 [shape = 'u8[8192]{0}', space=vmem, size = 0x2000, scoped, tag = 'input window, operand 4']
    #allocation8 [shape = 'u8[8192]{0}', space=vmem, size = 0x2000, scoped, tag = 'input window, operand 5']
    #allocation9 [shape = 'u8[8192]{0}', space=vmem, size = 0x2000, scoped, tag = 'output window, operand 0']
    %11 = vsyncpa [#allocation3], 0
    %12 = vsyncpa [#allocation6], 0
    %13 = vsyncpa [#allocation4], 0
    %s14 = scalar_lea.sflag [#allocation4], 1
    %15 = vsyncpa %s14, 0
    loop: start=0, step=1, limit=4
    $region2: #{tpu_custom_call.1} parent=1 // loop_pre_header
      _
    $region3: #{tpu_custom_call.1} parent=1 // loop_header
      %s17 = sphi 0, %s21
      %p18 = scmp.ge.s32.totalorder %s17, 4
      %s24 = sphi 0, %s36
      %s25 = sphi 0, %s32
      %s26 = sphi 0, %s24
      %s27 = sphi 0, %s25
      %s28 = sphi 0, %s26
      %s29 = sphi 0, %s27
      %s37 = sphi 0, %s37
      %s39 = sphi 0, %s37
      %s40 = sphi 0, %s39
      %s54 = sphi 0, %s40
      %s58 = sphi 0, %s58
      %s60 = sphi 0, %s58
      %s61 = sphi 0, %s60
      %s75 = sphi 0, %s61
      %s79 = sphi 0, %s79
      %s81 = sphi 0, %s79
      %s82 = sphi 0, %s81
      %s96 = sphi 0, %s82
      %s104 = sphi 0, %s106
      %s107 = sphi 0, %s104
      %s108 = sphi 0, %s107
      %s124 = sphi 0, %s108
      %s132 = sphi 0, %s134
      %s135 = sphi 0, %s132
      %s136 = sphi 0, %s135
      %s152 = sphi 0, %s136
      %s160 = sphi 0, %s162
      %s163 = sphi 0, %s160
      %s164 = sphi 0, %s163
      %s180 = sphi 0, %s164
      %s188 = sphi 0, %s190
      %s191 = sphi 0, %s188
      %s192 = sphi 0, %s191
      %s208 = sphi 0, %s192
    $region4: #{tpu_custom_call.1} parent=1 // loop_header_branch
      %20 = sbr.rel (%p18) target = $region8
    $region5: #{tpu_custom_call.1} parent=1 // loop_body
      %s22 = ssub.s32 %s17, 1
      %s23 = ssub.s32 %s17, 2
      %s30 = sadd.s32 1, %s25
      %p31 = scmp.ge.s32.totalorder %s30, 1
      %s32 = scalar_select %p31, 0, %s30
      %s33 = sadd.s32 1, %s24
      %s34 = scalar_select %p31, %s33, %s24
      %p35 = scmp.ge.s32.totalorder %s34, 2
      %s36 = scalar_select %p35, 0, %s34
      %s38 = sadd.s32 %s37, 1
      %p41 = scmp.eq.s32.totalorder %s17, 1
      %p42 = scmp.ne.s32.totalorder %s37, %s39
      %p43 = scmp.eq.s32.totalorder %s17, 0
      %p44 = por %p42, %p43
      %p45 = scmp.ne.s32.totalorder %s37, %s39
      %p46 = scmp.eq.s32.totalorder %s22, 1
      %p47 = por %p45, %p46
      %p48 = scmp.ne.s32.totalorder %s39, %s40
      %p49 = scmp.eq.s32.totalorder %s22, 0
      %p50 = por %p48, %p49
      %p51 = scmp.ne.s32.totalorder %s39, %s40
      %p52 = scmp.eq.s32.totalorder %s23, 1
      %p53 = por %p51, %p52
      %p55 = scmp.ne.s32.totalorder %s40, %s54
      %p56 = scmp.eq.s32.totalorder %s23, 0
      %p57 = por %p55, %p56
      %s59 = sadd.s32 %s58, 1
      %p62 = scmp.eq.s32.totalorder %s17, 1
      %p63 = scmp.ne.s32.totalorder %s58, %s60
      %p64 = scmp.eq.s32.totalorder %s17, 0
      %p65 = por %p63, %p64
      %p66 = scmp.ne.s32.totalorder %s58, %s60
      %p67 = scmp.eq.s32.totalorder %s22, 1
      %p68 = por %p66, %p67
      %p69 = scmp.ne.s32.totalorder %s60, %s61
      %p70 = scmp.eq.s32.totalorder %s22, 0
      %p71 = por %p69, %p70
      %p72 = scmp.ne.s32.totalorder %s60, %s61
      %p73 = scmp.eq.s32.totalorder %s23, 1
      %p74 = por %p72, %p73
      %p76 = scmp.ne.s32.totalorder %s61, %s75
      %p77 = scmp.eq.s32.totalorder %s23, 0
      %p78 = por %p76, %p77
      %s80 = sadd.s32 %s79, 1
      %p83 = scmp.eq.s32.totalorder %s17, 1
      %p84 = scmp.ne.s32.totalorder %s79, %s81
      %p85 = scmp.eq.s32.totalorder %s17, 0
      %p86 = por %p84, %p85
      %p87 = scmp.ne.s32.totalorder %s79, %s81
      %p88 = scmp.eq.s32.totalorder %s22, 1
      %p89 = por %p87, %p88
      %p90 = scmp.ne.s32.totalorder %s81, %s82
      %p91 = scmp.eq.s32.totalorder %s22, 0
      %p92 = por %p90, %p91
      %p93 = scmp.ne.s32.totalorder %s81, %s82
      %p94 = scmp.eq.s32.totalorder %s23, 1
      %p95 = por %p93, %p94
      %p97 = scmp.ne.s32.totalorder %s82, %s96
      %p98 = scmp.eq.s32.totalorder %s23, 0
      %p99 = por %p97, %p98
      %s100 = ssub.s32 %s24, %s36
      %s101 = ssub.s32 %s25, %s32
      %s102 = sor.u32 %s100, %s101
      %p103 = scmp.eq.s32.totalorder %s102, 0
      %s105 = sadd.s32 %s104, 1
      %s106 = scalar_select %p103, %s104, %s105
      %p109 = pneg %p103
      %p110 = scmp.eq.s32.totalorder %s17, 1
      %p111 = por %p109, %p110
      %p112 = scmp.ne.s32.totalorder %s104, %s107
      %p113 = scmp.eq.s32.totalorder %s17, 0
      %p114 = por %p112, %p113
      %p115 = scmp.ne.s32.totalorder %s104, %s107
      %p116 = scmp.eq.s32.totalorder %s22, 1
      %p117 = por %p115, %p116
      %p118 = scmp.ne.s32.totalorder %s107, %s108
      %p119 = scmp.eq.s32.totalorder %s22, 0
      %p120 = por %p118, %p119
      %p121 = scmp.ne.s32.totalorder %s107, %s108
      %p122 = scmp.eq.s32.totalorder %s23, 1
      %p123 = por %p121, %p122
      %p125 = scmp.ne.s32.totalorder %s108, %s124
      %p126 = scmp.eq.s32.totalorder %s23, 0
      %p127 = por %p125, %p126
      %s128 = ssub.s32 %s24, %s36
      %s129 = ssub.s32 %s25, %s32
      %s130 = sor.u32 %s128, %s129
      %p131 = scmp.eq.s32.totalorder %s130, 0
      %s133 = sadd.s32 %s132, 1
      %s134 = scalar_select %p131, %s132, %s133
      %p137 = pneg %p131
      %p138 = scmp.eq.s32.totalorder %s17, 1
      %p139 = por %p137, %p138
      %p140 = scmp.ne.s32.totalorder %s132, %s135
      %p141 = scmp.eq.s32.totalorder %s17, 0
      %p142 = por %p140, %p141
      %p143 = scmp.ne.s32.totalorder %s132, %s135
      %p144 = scmp.eq.s32.totalorder %s22, 1
      %p145 = por %p143, %p144
      %p146 = scmp.ne.s32.totalorder %s135, %s136
      %p147 = scmp.eq.s32.totalorder %s22, 0
      %p148 = por %p146, %p147
      %p149 = scmp.ne.s32.totalorder %s135, %s136
      %p150 = scmp.eq.s32.totalorder %s23, 1
      %p151 = por %p149, %p150
      %p153 = scmp.ne.s32.totalorder %s136, %s152
      %p154 = scmp.eq.s32.totalorder %s23, 0
      %p155 = por %p153, %p154
      %s156 = ssub.s32 %s24, %s36
      %s157 = ssub.s32 %s25, %s32
      %s158 = sor.u32 %s156, %s157
      %p159 = scmp.eq.s32.totalorder %s158, 0
      %s161 = sadd.s32 %s160, 1
      %s162 = scalar_select %p159, %s160, %s161
      %p165 = pneg %p159
      %p166 = scmp.eq.s32.totalorder %s17, 1
      %p167 = por %p165, %p166
      %p168 = scmp.ne.s32.totalorder %s160, %s163
      %p169 = scmp.eq.s32.totalorder %s17, 0
      %p170 = por %p168, %p169
      %p171 = scmp.ne.s32.totalorder %s160, %s163
      %p172 = scmp.eq.s32.totalorder %s22, 1
      %p173 = por %p171, %p172
      %p174 = scmp.ne.s32.totalorder %s163, %s164
      %p175 = scmp.eq.s32.totalorder %s22, 0
      %p176 = por %p174, %p175
      %p177 = scmp.ne.s32.totalorder %s163, %s164
      %p178 = scmp.eq.s32.totalorder %s23, 1
      %p179 = por %p177, %p178
      %p181 = scmp.ne.s32.totalorder %s164, %s180
      %p182 = scmp.eq.s32.totalorder %s23, 0
      %p183 = por %p181, %p182
      %s184 = ssub.s32 %s24, %s36
      %s185 = ssub.s32 %s25, %s32
      %s186 = sor.u32 %s184, %s185
      %p187 = scmp.eq.s32.totalorder %s186, 0
      %s189 = sadd.s32 %s188, 1
      %s190 = scalar_select %p187, %s188, %s189
      %p193 = pneg %p187
      %p194 = scmp.eq.s32.totalorder %s17, 1
      %p195 = por %p193, %p194
      %p196 = scmp.ne.s32.totalorder %s188, %s191
      %p197 = scmp.eq.s32.totalorder %s17, 0
      %p198 = por %p196, %p197
      %p199 = scmp.ne.s32.totalorder %s188, %s191
      %p200 = scmp.eq.s32.totalorder %s22, 1
      %p201 = por %p199, %p200
      %p202 = scmp.ne.s32.totalorder %s191, %s192
      %p203 = scmp.eq.s32.totalorder %s22, 0
      %p204 = por %p202, %p203
      %p205 = scmp.ne.s32.totalorder %s191, %s192
      %p206 = scmp.eq.s32.totalorder %s23, 1
      %p207 = por %p205, %p206
      %p209 = scmp.ne.s32.totalorder %s192, %s208
      %p210 = scmp.eq.s32.totalorder %s23, 0
      %p211 = por %p209, %p210
      %p212 = scmp.le.s32.totalorder 1, %s17
      %p213 = scmp.lt.s32.totalorder %s17, 3
      %p214 = pnand %p212, %p213
      %p215 = pneg %p214
      // Predicated region
      $region9: #{tpu_custom_call.1} parent=5 // pred_check
        _
      $region10: #{tpu_custom_call.1} parent=5 // pred_check_branch
        %217 = sbr.rel (%p214) target = $region12
      $region11: #{tpu_custom_call.1} parent=5 // pred_region
        %s218 = ssub.s32 %s17, 1
        // Predicated region
        $region13: #{tpu_custom_call.1} parent=11 // pred_check
          %p219 = pneg %p50
        $region14: #{tpu_custom_call.1} parent=11 // pred_check_branch
          %221 = sbr.rel (%p219) target = $region16
        $region15: #{tpu_custom_call.1} parent=11 // pred_region
          _
        $region16: #{tpu_custom_call.1} parent=11 // pred_fallthru
          _
        // Predicated region
        $region17: #{tpu_custom_call.1} parent=11 // pred_check
          %p222 = pneg %p71
        $region18: #{tpu_custom_call.1} parent=11 // pred_check_branch
          %224 = sbr.rel (%p222) target = $region20
        $region19: #{tpu_custom_call.1} parent=11 // pred_region
          %s226 = ssub.s32 64, 64
          %227 = vsyncadd [#allocation3], %s226
          %s229 = sshll.u32 [#allocation2], 4
          %s230 = int_to_ptr.vmem [resolvable:$true] %s229
          %232 = dma.hbm_to_vmem [thread:$0]  %s1, 64, %s230, [#allocation3]
        $region20: #{tpu_custom_call.1} parent=11 // pred_fallthru
          _
        // Predicated region
        $region21: #{tpu_custom_call.1} parent=11 // pred_check
          %p233 = pneg %p92
        $region22: #{tpu_custom_call.1} parent=11 // pred_check_branch
          %235 = sbr.rel (%p233) target = $region24
        $region23: #{tpu_custom_call.1} parent=11 // pred_region
          %s237 = ssub.s32 64, 64
          %238 = vsyncadd [#allocation6], %s237
          %s240 = sshll.u32 [#allocation5], 4
          %s241 = int_to_ptr.vmem [resolvable:$true] %s240
          %243 = dma.hbm_to_vmem [thread:$0]  %s2, 64, %s241, [#allocation6]
        $region24: #{tpu_custom_call.1} parent=11 // pred_fallthru
          _
      $region12: #{tpu_custom_call.1} parent=5 // pred_fallthru
        _
      %p244 = scmp.lt.s32.totalorder %s17, 2
      // Predicated region
      $region25: #{tpu_custom_call.1} parent=5 // pred_check
        %p245 = pneg %p244
      $region26: #{tpu_custom_call.1} parent=5 // pred_check_branch
        %247 = sbr.rel (%p245) target = $region28
      $region27: #{tpu_custom_call.1} parent=5 // pred_region
        // Predicated region
        $region29: #{tpu_custom_call.1} parent=27 // pred_check
          %p248 = pneg %p114
        $region30: #{tpu_custom_call.1} parent=27 // pred_check_branch
          %250 = sbr.rel (%p248) target = $region32
        $region31: #{tpu_custom_call.1} parent=27 // pred_region
          %p251 = scmp.lt.s32.totalorder %s24, 1
          %s252 = scalar_select %p251, %s24, 1
          %p253 = scmp.lt.s32.totalorder %s25, 0
          %s254 = scalar_select %p253, %s25, 0
          %s255 = sadd.s32 %s254, %s252
          %s256 = smul.addr %s255, 8
          %s257 = scalar_lea.vmem %s3, %s256
        $region32: #{tpu_custom_call.1} parent=27 // pred_fallthru
          _
        // Predicated region
        $region33: #{tpu_custom_call.1} parent=27 // pred_check
          %p258 = pneg %p142
        $region34: #{tpu_custom_call.1} parent=27 // pred_check_branch
          %260 = sbr.rel (%p258) target = $region36
        $region35: #{tpu_custom_call.1} parent=27 // pred_region
          %s261 = sand.u32 %s17, 1
          %s262 = scalar_lea.sflag [#allocation3], %s261
          %s263 = sand.u32 %s132, 1
          %s264 = smul.addr %s263, 8
          %s265 = scalar_lea.vmem [#allocation7], %s264
          %s267 = ssub.s32 128, 128
          %268 = vsyncadd %s262, %s267
          %s269 = sadd.s32 %s25, %s24
          %s270 = smul.addr %s269, 128
          %s271 = scalar_lea.hbm %s4, %s270
          %s273 = sshll.u32 %s265, 4
          %s274 = int_to_ptr.vmem [resolvable:$true] %s273
          %276 = dma.hbm_to_vmem [thread:$0]  %s271, 128, %s274, %s262
        $region36: #{tpu_custom_call.1} parent=27 // pred_fallthru
          _
        // Predicated region
        $region37: #{tpu_custom_call.1} parent=27 // pred_check
          %p277 = pneg %p170
        $region38: #{tpu_custom_call.1} parent=27 // pred_check_branch
          %279 = sbr.rel (%p277) target = $region40
        $region39: #{tpu_custom_call.1} parent=27 // pred_region
          %s280 = sand.u32 %s17, 1
          %s281 = scalar_lea.sflag [#allocation3], %s280
          %s282 = sand.u32 %s160, 1
          %s283 = smul.addr %s282, 8
          %s284 = scalar_lea.vmem [#allocation8], %s283
          %s286 = ssub.s32 128, 128
          %287 = vsyncadd %s281, %s286
          %s288 = sadd.s32 %s25, %s24
          %s289 = smul.addr %s288, 128
          %s290 = scalar_lea.hbm %s5, %s289
          %s292 = sshll.u32 %s284, 4
          %s293 = int_to_ptr.vmem [resolvable:$true] %s292
          %295 = dma.hbm_to_vmem [thread:$0]  %s290, 128, %s293, %s281
        $region40: #{tpu_custom_call.1} parent=27 // pred_fallthru
          _
      $region28: #{tpu_custom_call.1} parent=5 // pred_fallthru
        _
      %p296 = scmp.le.s32.totalorder 1, %s17
      %p297 = scmp.lt.s32.totalorder %s17, 3
      %p298 = pnand %p296, %p297
      %p299 = pneg %p298
      // Predicated region
      $region41: #{tpu_custom_call.1} parent=5 // pred_check
        _
      $region42: #{tpu_custom_call.1} parent=5 // pred_check_branch
        %301 = sbr.rel (%p298) target = $region44
      $region43: #{tpu_custom_call.1} parent=5 // pred_region
        %s302 = ssub.s32 %s17, 1
        // Predicated region
        $region45: #{tpu_custom_call.1} parent=43 // pred_check
          %p303 = pneg %p71
        $region46: #{tpu_custom_call.1} parent=43 // pred_check_branch
          %305 = sbr.rel (%p303) target = $region48
        $region47: #{tpu_custom_call.1} parent=43 // pred_region
          %306 = dma.done [#allocation3], 64
        $region48: #{tpu_custom_call.1} parent=43 // pred_fallthru
          _
        // Predicated region
        $region49: #{tpu_custom_call.1} parent=43 // pred_check
          %p307 = pneg %p92
        $region50: #{tpu_custom_call.1} parent=43 // pred_check_branch
          %309 = sbr.rel (%p307) target = $region52
        $region51: #{tpu_custom_call.1} parent=43 // pred_region
          %310 = dma.done [#allocation6], 64
        $region52: #{tpu_custom_call.1} parent=43 // pred_fallthru
          _
        %s311 = sand.u32 %s22, 1
        %s312 = scalar_lea.sflag [#allocation3], %s311
        %s313 = sand.u32 %s135, 1
        %s314 = smul.addr %s313, 8
        %s315 = scalar_lea.vmem [#allocation7], %s314
        // Predicated region
        $region53: #{tpu_custom_call.1} parent=43 // pred_check
          %p316 = pneg %p148
        $region54: #{tpu_custom_call.1} parent=43 // pred_check_branch
          %318 = sbr.rel (%p316) target = $region56
        $region55: #{tpu_custom_call.1} parent=43 // pred_region
          %319 = dma.done %s312, 128
        $region56: #{tpu_custom_call.1} parent=43 // pred_fallthru
          _
        %s320 = sand.u32 %s22, 1
        %s321 = scalar_lea.sflag [#allocation3], %s320
        %s322 = sand.u32 %s163, 1
        %s323 = smul.addr %s322, 8
        %s324 = scalar_lea.vmem [#allocation8], %s323
        // Predicated region
        $region57: #{tpu_custom_call.1} parent=43 // pred_check
          %p325 = pneg %p176
        $region58: #{tpu_custom_call.1} parent=43 // pred_check_branch
          %327 = sbr.rel (%p325) target = $region60
        $region59: #{tpu_custom_call.1} parent=43 // pred_region
          %328 = dma.done %s321, 128
        $region60: #{tpu_custom_call.1} parent=43 // pred_fallthru
          _
        %p329 = pneg %p50
        %p330 = pneg %p47
        %p331 = pneg %p71
        %p332 = pneg %p68
        %p333 = pneg %p92
        %p334 = pneg %p89
        %p335 = scmp.lt.s32.totalorder %s26, 1
        %s336 = scalar_select %p335, %s26, 1
        %p337 = scmp.lt.s32.totalorder %s27, 0
        %s338 = scalar_select %p337, %s27, 0
        %s339 = sadd.s32 %s338, %s336
        %s340 = smul.addr %s339, 8
        %s341 = scalar_lea.vmem %s3, %s340
        %p342 = pneg %p120
        %p343 = pneg %p117
        %s344 = sand.u32 %s22, 1
        %s345 = scalar_lea.sflag [#allocation3], %s344
        %s346 = sand.u32 %s135, 1
        %s347 = smul.addr %s346, 8
        %s348 = scalar_lea.vmem [#allocation7], %s347
        %p349 = pneg %p148
        %p350 = pneg %p145
        %s351 = sand.u32 %s22, 1
        %s352 = scalar_lea.sflag [#allocation3], %s351
        %s353 = sand.u32 %s163, 1
        %s354 = smul.addr %s353, 8
        %s355 = scalar_lea.vmem [#allocation8], %s354
        %p356 = pneg %p176
        %p357 = pneg %p173
        %p358 = pneg %p204
        %p359 = pneg %p201
        %s360 = sand.u32 %s191, 1
        %s361 = scalar_lea.sflag [#allocation4], %s360
        %s362 = sand.u32 %s191, 1
        %s363 = smul.addr %s362, 8
        %s364 = scalar_lea.vmem [#allocation9], %s363
        %p365 = scmp.lt.s32.totalorder %s26, 1
        %s366 = scalar_select %p365, %s26, 1
        %p367 = scmp.lt.s32.totalorder %s27, 0
        %s368 = scalar_select %p367, %s27, 0
        %s369 = sadd.s32 %s368, %s366
        %s370 = smul.addr %s369, 8
        %s371 = scalar_lea.vmem %s3, %s370
        %v373 = vld [vmem:[%s0] sm:$0xf]
        %v374 = vld [vmem:[%s0 + $0x4] sm:$0xf]
        %v375 = vld [vmem:[%s371] sm:$0xff]
        %v376 = vpack.c.bf16 %v375, %v375
        %v379 = vunpack.c.l.b16 %v373
        %v380 = vunpack.c.l.b16 %v374
        %v381 = vpack.c.b16 %v380, %v379
        %vm382 = vcmask 64512
        %v384 = vsel %vm382, %v381, 0
        %vm386 = vcmask 1043456
        %v388 = vsel %vm386, %v376, 0
        %390 = vmatprep.subr.bf16.mxu0 0
        %391 = vmatpush1.bf16.msra.mxu0 0
        %392 = vmatprep.subr.bf16.mxu0 0
        %393 = vmatpush1.bf16.msra.mxu0 0
        %394 = vmatprep.subr.bf16.mxu0 0
        %395 = vmatpush1.bf16.msra.mxu0 0
        %396 = vmatprep.subr.bf16.mxu0 0
        %397 = vmatpush1.bf16.msra.mxu0 0
        %398 = vmatprep.subr.bf16.mxu0 0
        %399 = vmatpush1.bf16.msra.mxu0 0
        %400 = vmatprep.subr.bf16.mxu0 0
        %401 = vmatpush1.bf16.msra.mxu0 0
        %402 = vmatprep.subr.bf16.mxu0 0
        %403 = vmatpush1.bf16.msra.mxu0 0
        %404 = vmatprep.subr.bf16.mxu0 0
        %405 = vmatpush1.bf16.msra.mxu0 %v388
        %406 = vmatprep.subr.bf16.mxu0 0
        %407 = vmatpush2.bf16.msra.mxu0 0
        %408 = vmatprep.subr.bf16.mxu0 0
        %409 = vmatpush2.bf16.msra.mxu0 0
        %410 = vmatprep.subr.bf16.mxu0 0
        %411 = vmatpush2.bf16.msra.mxu0 0
        %412 = vmatprep.subr.bf16.mxu0 0
        %413 = vmatpush2.bf16.msra.mxu0 0
        %414 = vmatprep.subr.bf16.mxu0 0
        %415 = vmatpush2.bf16.msra.mxu0 0
        %416 = vmatprep.subr.bf16.mxu0 0
        %417 = vmatpush2.bf16.msra.mxu0 0
        %418 = vmatprep.subr.bf16.mxu0 0
        %419 = vmatpush2.bf16.msra.mxu0 0
        %420 = vmatprep.subr.bf16.mxu0 0
        %421 = vmatpush2.bf16.msra.mxu0 0
        %422 = vmatprep.mubr.bf16.mxu0 0
        %423 = vmatmul.mubr.bf16.gmra.mxu0 %v384
        %v424 = vpop.f32.mrf.mxu0
        %v425 = vadd.f32 0.0, %v424
        %v426 = vpop.f32.mrf.mxu0
        %v427 = vpop.f32.mrf.mxu0
        %v428 = vadd.f32 0.0, %v427
        %v429 = vpop.f32.mrf.mxu0
        %430 = vdwg.mxu0
        %v431 = vld [vmem:[%s315] sm:$0xff]
        %v432 = vpack.c.bf16 %v431, %v431
        %v434 = vsel %vm386, %v432, 0
        %436 = vmatprep.subr.bf16.mxu0 0
        %437 = vmatpush1.bf16.msra.mxu0 0
        %438 = vmatprep.subr.bf16.mxu0 0
        %439 = vmatpush1.bf16.msra.mxu0 0
        %440 = vmatprep.subr.bf16.mxu0 0
        %441 = vmatpush1.bf16.msra.mxu0 0
        %442 = vmatprep.subr.bf16.mxu0 0
        %443 = vmatpush1.bf16.msra.mxu0 0
        %444 = vmatprep.subr.bf16.mxu0 0
        %445 = vmatpush1.bf16.msra.mxu0 0
        %446 = vmatprep.subr.bf16.mxu0 0
        %447 = vmatpush1.bf16.msra.mxu0 0
        %448 = vmatprep.subr.bf16.mxu0 0
        %449 = vmatpush1.bf16.msra.mxu0 0
        %450 = vmatprep.subr.bf16.mxu0 0
        %451 = vmatpush1.bf16.msra.mxu0 %v434
        %452 = vmatprep.subr.bf16.mxu0 0
        %453 = vmatpush2.bf16.msra.mxu0 0
        %454 = vmatprep.subr.bf16.mxu0 0
        %455 = vmatpush2.bf16.msra.mxu0 0
        %456 = vmatprep.subr.bf16.mxu0 0
        %457 = vmatpush2.bf16.msra.mxu0 0
        %458 = vmatprep.subr.bf16.mxu0 0
        %459 = vmatpush2.bf16.msra.mxu0 0
        %460 = vmatprep.subr.bf16.mxu0 0
        %461 = vmatpush2.bf16.msra.mxu0 0
        %462 = vmatprep.subr.bf16.mxu0 0
        %463 = vmatpush2.bf16.msra.mxu0 0
        %464 = vmatprep.subr.bf16.mxu0 0
        %465 = vmatpush2.bf16.msra.mxu0 0
        %466 = vmatprep.subr.bf16.mxu0 0
        %467 = vmatpush2.bf16.msra.mxu0 0
        %468 = vmatprep.mubr.bf16.mxu0 0
        %469 = vmatmul.mubr.bf16.gmra.mxu0 %v384
        %v470 = vpop.f32.mrf.mxu0
        %v471 = vadd.f32 0.0, %v470
        %v472 = vpop.f32.mrf.mxu0
        %v473 = vpop.f32.mrf.mxu0
        %v474 = vadd.f32 0.0, %v473
        %v475 = vpop.f32.mrf.mxu0
        %476 = vdwg.mxu0
        %v477 = vld [vmem:[#allocation2] sm:$0xf]
        %v478 = vmul.f32 %v425, %v471
        %v479 = vmul.f32 %v428, %v474
        %v480 = vadd.f32 %v478, %v479
        %v481 = vmul.f32 %v428, %v471
        %v482 = vmul.f32 %v425, %v474
        %v483 = vsub.f32 %v481, %v482
        %v484 = vpack.c.bf16 %v483, %v480
        %vm485 = vcmask 130048
        %v487 = vsel %vm485, %v477, 0
        %489 = vmatprep.subr.bf16.mxu0 0
        %490 = vmatpush1.bf16.msra.mxu0 0
        %491 = vmatprep.subr.bf16.mxu0 0
        %492 = vmatpush1.bf16.msra.mxu0 0
        %493 = vmatprep.subr.bf16.mxu0 0
        %494 = vmatpush1.bf16.msra.mxu0 0
        %495 = vmatprep.subr.bf16.mxu0 0
        %496 = vmatpush1.bf16.msra.mxu0 0
        %497 = vmatprep.subr.bf16.mxu0 0
        %498 = vmatpush1.bf16.msra.mxu0 0
        %499 = vmatprep.subr.bf16.mxu0 0
        %500 = vmatpush1.bf16.msra.mxu0 0
        %501 = vmatprep.subr.bf16.mxu0 0
        %502 = vmatpush1.bf16.msra.mxu0 0
        %503 = vmatprep.subr.bf16.mxu0 0
        %504 = vmatpush1.bf16.msra.mxu0 %v484
        %505 = vmatprep.subr.bf16.mxu0 0
        %506 = vmatpush2.bf16.msra.mxu0 0
        %507 = vmatprep.subr.bf16.mxu0 0
        %508 = vmatpush2.bf16.msra.mxu0 0
        %509 = vmatprep.subr.bf16.mxu0 0
        %510 = vmatpush2.bf16.msra.mxu0 0
        %511 = vmatprep.subr.bf16.mxu0 0
        %512 = vmatpush2.bf16.msra.mxu0 0
        %513 = vmatprep.subr.bf16.mxu0 0
        %514 = vmatpush2.bf16.msra.mxu0 0
        %515 = vmatprep.subr.bf16.mxu0 0
        %516 = vmatpush2.bf16.msra.mxu0 0
        %517 = vmatprep.subr.bf16.mxu0 0
        %518 = vmatpush2.bf16.msra.mxu0 0
        %519 = vmatprep.subr.bf16.mxu0 0
        %520 = vmatpush2.bf16.msra.mxu0 0
        %521 = vmatprep.mubr.bf16.mxu0 0
        %522 = vmatmul.mubr.bf16.gmra.mxu0 %v487
        %v523 = vpop.f32.mrf.mxu0
        %v524 = vadd.f32 0.0, %v523
        %v525 = vpop.f32.mrf.mxu0
        %v526 = vpop.f32.mrf.mxu0
        %v527 = vpop.f32.mrf.mxu0
        %528 = vdwg.mxu0
        %v529 = vlaneseq
        %v530 = vshrl.u32 %v529, 7
        %v531 = vrot.slane %v524, 4
        %v532 = vmax.f32 %v524, %v531
        %v533 = vrot.slane %v532, 2
        %v534 = vmax.f32 %v532, %v533
        %v535 = vrot.slane %v534, 1
        %v536 = vmax.f32 %v534, %v535
        %vm537 = vcmp.eq.f32.partialorder %v524, %v536
        %v538 = vsel %vm537, %v530, 8
        %v539 = vrot.slane %v538, 4
        %vm540 = vcmp.lt.s32.totalorder %v538, %v539
        %v541 = vsel %vm540, %v538, %v539
        %v542 = vrot.slane %v541, 2
        %vm543 = vcmp.lt.s32.totalorder %v541, %v542
        %v544 = vsel %vm543, %v541, %v542
        %v545 = vrot.slane %v544, 1
        %vm546 = vcmp.lt.s32.totalorder %v544, %v545
        %v547 = vsel %vm546, %v544, %v545
        %vm548 = vcmp.eq.s32.totalorder %v530, %v547
        %v549 = vsel %vm548, -inf, %v524
        %v550 = vrot.slane %v549, 4
        %v551 = vmax.f32 %v549, %v550
        %v552 = vrot.slane %v551, 2
        %v553 = vmax.f32 %v551, %v552
        %v554 = vrot.slane %v553, 1
        %v555 = vmax.f32 %v553, %v554
        %vm556 = vcmp.eq.f32.partialorder %v549, %v555
        %v557 = vsel %vm556, %v530, 8
        %v558 = vrot.slane %v557, 4
        %vm559 = vcmp.lt.s32.totalorder %v557, %v558
        %v560 = vsel %vm559, %v557, %v558
        %v561 = vrot.slane %v560, 2
        %vm562 = vcmp.lt.s32.totalorder %v560, %v561
        %v563 = vsel %vm562, %v560, %v561
        %v564 = vrot.slane %v563, 1
        %vm565 = vcmp.lt.s32.totalorder %v563, %v564
        %v566 = vsel %vm565, %v563, %v564
        %v567 = vmax.f32 %v536, %v555
        %v568 = vsub.f32 %v536, %v567
        %v569 = vmul.f32 %v568, 1.442695
        %v570 = vpow.pop %v569
        %v571 = vsub.f32 %v555, %v567
        %v572 = vmul.f32 %v571, 1.442695
        %v573 = vpow.pop %v572
        %v574 = vadd.f32 %v570, %v573
        %v575 = vrcp.pop %v574
        %v576 = vmul.f32 1.0, %v575
        %v577 = vmul.f32 %v570, %v576
        %v578 = vsel %vm548, %v577, 0.0
        %v579 = vadd.f32 %v578, 0.0
        %vm580 = vcmp.eq.s32.totalorder %v530, %v566
        %v581 = vmul.f32 %v573, %v576
        %v582 = vsel %vm580, %v581, 0.0
        %v583 = vadd.f32 %v579, %v582
        %v584 = vld [vmem:[%s324] sm:$0xff]
        %v585 = vpack.c.bf16 %v584, %v584
        %v587 = vsel %vm386, %v585, 0
        %589 = vmatprep.subr.bf16.mxu0 0
        %590 = vmatpush1.bf16.msra.mxu0 0
        %591 = vmatprep.subr.bf16.mxu0 0
        %592 = vmatpush1.bf16.msra.mxu0 0
        %593 = vmatprep.subr.bf16.mxu0 0
        %594 = vmatpush1.bf16.msra.mxu0 0
        %595 = vmatprep.subr.bf16.mxu0 0
        %596 = vmatpush1.bf16.msra.mxu0 0
        %597 = vmatprep.subr.bf16.mxu0 0
        %598 = vmatpush1.bf16.msra.mxu0 0
        %599 = vmatprep.subr.bf16.mxu0 0
        %600 = vmatpush1.bf16.msra.mxu0 0
        %601 = vmatprep.subr.bf16.mxu0 0
        %602 = vmatpush1.bf16.msra.mxu0 0
        %603 = vmatprep.subr.bf16.mxu0 0
        %604 = vmatpush1.bf16.msra.mxu0 %v587
        %605 = vmatprep.subr.bf16.mxu0 0
        %606 = vmatpush2.bf16.msra.mxu0 0
        %607 = vmatprep.subr.bf16.mxu0 0
        %608 = vmatpush2.bf16.msra.mxu0 0
        %609 = vmatprep.subr.bf16.mxu0 0
        %610 = vmatpush2.bf16.msra.mxu0 0
        %611 = vmatprep.subr.bf16.mxu0 0
        %612 = vmatpush2.bf16.msra.mxu0 0
        %613 = vmatprep.subr.bf16.mxu0 0
        %614 = vmatpush2.bf16.msra.mxu0 0
        %615 = vmatprep.subr.bf16.mxu0 0
        %616 = vmatpush2.bf16.msra.mxu0 0
        %617 = vmatprep.subr.bf16.mxu0 0
        %618 = vmatpush2.bf16.msra.mxu0 0
        %619 = vmatprep.subr.bf16.mxu0 0
        %620 = vmatpush2.bf16.msra.mxu0 0
        %621 = vmatprep.mubr.bf16.mxu0 0
        %622 = vmatmul.mubr.bf16.gmra.mxu0 %v384
        %v623 = vpop.f32.mrf.mxu0
        %v624 = vadd.f32 0.0, %v623
        %v625 = vpop.f32.mrf.mxu0
        %v626 = vpop.f32.mrf.mxu0
        %v627 = vadd.f32 0.0, %v626
        %v628 = vpop.f32.mrf.mxu0
        %629 = vdwg.mxu0
        %v630 = vpack.c.bf16 %v583, %v583
        %v632 = vsel %vm386, %v630, 0
        %634 = vmatprep.subr.bf16.mxu0 0
        %635 = vmatpush1.bf16.msra.mxu0 0
        %636 = vmatprep.subr.bf16.mxu0 0
        %637 = vmatpush1.bf16.msra.mxu0 0
        %638 = vmatprep.subr.bf16.mxu0 0
        %639 = vmatpush1.bf16.msra.mxu0 0
        %640 = vmatprep.subr.bf16.mxu0 0
        %641 = vmatpush1.bf16.msra.mxu0 0
        %642 = vmatprep.subr.bf16.mxu0 0
        %643 = vmatpush1.bf16.msra.mxu0 0
        %644 = vmatprep.subr.bf16.mxu0 0
        %645 = vmatpush1.bf16.msra.mxu0 0
        %646 = vmatprep.subr.bf16.mxu0 0
        %647 = vmatpush1.bf16.msra.mxu0 0
        %648 = vmatprep.subr.bf16.mxu0 0
        %649 = vmatpush1.bf16.msra.mxu0 %v632
        %650 = vmatprep.subr.bf16.mxu0 0
        %651 = vmatpush2.bf16.msra.mxu0 0
        %652 = vmatprep.subr.bf16.mxu0 0
        %653 = vmatpush2.bf16.msra.mxu0 0
        %654 = vmatprep.subr.bf16.mxu0 0
        %655 = vmatpush2.bf16.msra.mxu0 0
        %656 = vmatprep.subr.bf16.mxu0 0
        %657 = vmatpush2.bf16.msra.mxu0 0
        %658 = vmatprep.subr.bf16.mxu0 0
        %659 = vmatpush2.bf16.msra.mxu0 0
        %660 = vmatprep.subr.bf16.mxu0 0
        %661 = vmatpush2.bf16.msra.mxu0 0
        %662 = vmatprep.subr.bf16.mxu0 0
        %663 = vmatpush2.bf16.msra.mxu0 0
        %664 = vmatprep.subr.bf16.mxu0 0
        %665 = vmatpush2.bf16.msra.mxu0 0
        %666 = vmatprep.mubr.bf16.mxu0 0
        %667 = vmatmul.mubr.bf16.gmra.mxu0 %v384
        %v668 = vpop.f32.mrf.mxu0
        %v669 = vadd.f32 0.0, %v668
        %v670 = vpop.f32.mrf.mxu0
        %v671 = vpop.f32.mrf.mxu0
        %v672 = vadd.f32 0.0, %v671
        %v673 = vpop.f32.mrf.mxu0
        %674 = vdwg.mxu0
        %v675 = vld [vmem:[#allocation5] sm:$0xf]
        %v676 = vmul.f32 %v624, %v669
        %v677 = vmul.f32 %v627, %v672
        %v678 = vadd.f32 %v676, %v677
        %v679 = vmul.f32 %v627, %v669
        %v680 = vmul.f32 %v624, %v672
        %v681 = vsub.f32 %v679, %v680
        %v682 = vpack.c.bf16 %v681, %v678
        %v684 = vsel %vm485, %v675, 0
        %686 = vmatprep.subr.bf16.mxu0 0
        %687 = vmatpush1.bf16.msra.mxu0 0
        %688 = vmatprep.subr.bf16.mxu0 0
        %689 = vmatpush1.bf16.msra.mxu0 0
        %690 = vmatprep.subr.bf16.mxu0 0
        %691 = vmatpush1.bf16.msra.mxu0 0
        %692 = vmatprep.subr.bf16.mxu0 0
        %693 = vmatpush1.bf16.msra.mxu0 0
        %694 = vmatprep.subr.bf16.mxu0 0
        %695 = vmatpush1.bf16.msra.mxu0 0
        %696 = vmatprep.subr.bf16.mxu0 0
        %697 = vmatpush1.bf16.msra.mxu0 0
        %698 = vmatprep.subr.bf16.mxu0 0
        %699 = vmatpush1.bf16.msra.mxu0 0
        %700 = vmatprep.subr.bf16.mxu0 0
        %701 = vmatpush1.bf16.msra.mxu0 %v682
        %702 = vmatprep.subr.bf16.mxu0 0
        %703 = vmatpush2.bf16.msra.mxu0 0
        %704 = vmatprep.subr.bf16.mxu0 0
        %705 = vmatpush2.bf16.msra.mxu0 0
        %706 = vmatprep.subr.bf16.mxu0 0
        %707 = vmatpush2.bf16.msra.mxu0 0
        %708 = vmatprep.subr.bf16.mxu0 0
        %709 = vmatpush2.bf16.msra.mxu0 0
        %710 = vmatprep.subr.bf16.mxu0 0
        %711 = vmatpush2.bf16.msra.mxu0 0
        %712 = vmatprep.subr.bf16.mxu0 0
        %713 = vmatpush2.bf16.msra.mxu0 0
        %714 = vmatprep.subr.bf16.mxu0 0
        %715 = vmatpush2.bf16.msra.mxu0 0
        %716 = vmatprep.subr.bf16.mxu0 0
        %717 = vmatpush2.bf16.msra.mxu0 0
        %718 = vmatprep.mubr.bf16.mxu0 0
        %719 = vmatmul.mubr.bf16.gmra.mxu0 %v684
        %v720 = vpop.f32.mrf.mxu0
        %v721 = vadd.f32 0.0, %v720
        %v722 = vpop.f32.mrf.mxu0
        %v723 = vpop.f32.mrf.mxu0
        %v724 = vpop.f32.mrf.mxu0
        %725 = vdwg.mxu0
        %726 = vst [vmem:[%s364] sm:$0xff] %v721
        %s727 = sand.u32 %s191, 1
        %s728 = scalar_lea.sflag [#allocation4], %s727
        %s729 = sand.u32 %s191, 1
        %s730 = smul.addr %s729, 8
        %s731 = scalar_lea.vmem [#allocation9], %s730
        // Predicated region
        $region61: #{tpu_custom_call.1} parent=43 // pred_check
          %p732 = pneg %p201
        $region62: #{tpu_custom_call.1} parent=43 // pred_check_branch
          %734 = sbr.rel (%p732) target = $region64
        $region63: #{tpu_custom_call.1} parent=43 // pred_region
          %s736 = ssub.s32 128, 128
          %737 = vsyncadd %s728, %s736
          %s738 = sadd.s32 %s27, %s26
          %s739 = smul.addr %s738, 128
          %s740 = scalar_lea.hbm %s6, %s739
          %s742 = sshll.u32 %s731, 4
          %s743 = int_to_ptr.vmem [resolvable:$true] %s742
          %745 = dma.vmem_to_hbm [thread:$0]  %s743, 128, %s740, %s728
        $region64: #{tpu_custom_call.1} parent=43 // pred_fallthru
          _
      $region44: #{tpu_custom_call.1} parent=5 // pred_fallthru
        _
      %p746 = scmp.le.s32.totalorder 2, %s17
      // Predicated region
      $region65: #{tpu_custom_call.1} parent=5 // pred_check
        %p747 = pneg %p746
      $region66: #{tpu_custom_call.1} parent=5 // pred_check_branch
        %749 = sbr.rel (%p747) target = $region68
      $region67: #{tpu_custom_call.1} parent=5 // pred_region
        %s750 = ssub.s32 %s17, 2
        // Predicated region
        $region69: #{tpu_custom_call.1} parent=67 // pred_check
          %p751 = pneg %p207
        $region70: #{tpu_custom_call.1} parent=67 // pred_check_branch
          %753 = sbr.rel (%p751) target = $region72
        $region71: #{tpu_custom_call.1} parent=67 // pred_region
          %s754 = sand.u32 %s192, 1
          %s755 = scalar_lea.sflag [#allocation4], %s754
          %s756 = sand.u32 %s192, 1
          %s757 = smul.addr %s756, 8
          %s758 = scalar_lea.vmem [#allocation9], %s757
          %759 = dma.done %s755, 128
        $region72: #{tpu_custom_call.1} parent=67 // pred_fallthru
          _
      $region68: #{tpu_custom_call.1} parent=5 // pred_fallthru
        _
    $region6: #{tpu_custom_call.1} parent=1 // loop_footer
      %s21 = sadd.s32 1, %s17
    $region7: #{tpu_custom_call.1} parent=1 // loop_footer_branch
      %16 = sbr.rel target = $region3
    $region8: #{tpu_custom_call.1} parent=1 // loop_exit
      _
    %760 = vsyncpa [#allocation3], 1
    %s761 = scalar_lea.sflag [#allocation3], 1
    %762 = vsyncpa %s761, 1
    %763 = vsyncpa [#allocation6], 1
    %764 = vsyncpa [#allocation4], 1
    %s765 = scalar_lea.sflag [#allocation4], 1
    %766 = vsyncpa %s765, 1

</llo_original>
